<compile_context>
chip_gen: v5e
topology: v5e:2x2
jax: 0.10.0
libtpu: 0.0.40
codegen_flags: <defaults>
</compile_context>

<pallas_src>
import functools

import numpy as np
import jax
import jax.numpy as jnp
from jax.experimental import pallas as pl
from jax.experimental.pallas import tpu as pltpu

NEG_SLOPE = 0.2


def _leaky(x):
    # PyTorch LeakyReLU(negative_slope=0.2)
    return jnp.where(x > 0, x, NEG_SLOPE * x)


# --------------------------------------------------------------------------
# Pallas kernels
# --------------------------------------------------------------------------

def mlp2_kernel(x_ref, w1_ref, b1_ref, w2_ref, b2_ref, o_ref, *, final_act):
    """SimpleLinearBlock(n_layer=2): Linear -> LeakyReLU -> Linear (-> LeakyReLU)."""
    h = _leaky(jnp.dot(x_ref[...], w1_ref[...],
                       preferred_element_type=jnp.float32) + b1_ref[...])
    y = jnp.dot(h, w2_ref[...], preferred_element_type=jnp.float32) + b2_ref[...]
    o_ref[...] = _leaky(y) if final_act else y


def pre_gates_kernel(x_ref, w1_ref, b1_ref, w2_ref, b2_ref, wg_ref, bg_ref, o_ref):
    """pre_rnn (2-layer MLP, act=True) fused with the GRU layer-0 input-to-gates
    projection.  Output: gi0 = pre_rnn(x) @ Wih0^T + bih0, shape (rows, 3E)."""
    h = _leaky(jnp.dot(x_ref[...], w1_ref[...],
                       preferred_element_type=jnp.float32) + b1_ref[...])
    h = _leaky(jnp.dot(h, w2_ref[...],
                       preferred_element_type=jnp.float32) + b2_ref[...])
    o_ref[...] = jnp.dot(h, wg_ref[...],
                         preferred_element_type=jnp.float32) + bg_ref[...]


def _gru_cell(gi, gh, h_prev, E):
    # PyTorch gate order: (r, z, n)
    r = jax.nn.sigmoid(gi[:, 0:E] + gh[:, 0:E])
    z = jax.nn.sigmoid(gi[:, E:2 * E] + gh[:, E:2 * E])
    n = jnp.tanh(gi[:, 2 * E:3 * E] + r * gh[:, 2 * E:3 * E])
    return (1.0 - z) * n + z * h_prev


def gru_chunk_kernel(gi0_ref, wih_ref, whh_ref, bih_ref, bhh_ref, h0_ref,
                     yseq_ref, hfin_ref, h_scratch,
                     *, n_layers, hidden, t_total, t_chunk, masked, unroll):
    """Multi-layer GRU over one chunk of `t_chunk` time steps.

    gi0_ref  : (Tc, B, 3E) precomputed layer-0 input gates (hoisted matmul)
    wih_ref  : (L, E, 3E)  input->gates weights (layer 0 slice unused)
    whh_ref  : (L, E, 3E)  hidden->gates weights
    bih_ref  : (L, 1, 3E)  input bias
    bhh_ref  : (L, 1, 3E)  hidden bias
    h0_ref   : (L, B, E)   initial hidden state
    yseq_ref : (Tc, B, E)  top-layer outputs for this chunk (written back per chunk)
    hfin_ref : (L, B, E)   final hidden state (resident accumulator)
    h_scratch: (L, B, E)   persistent hidden state across chunks
    """
    E = hidden
    c = pl.program_id(0)

    @pl.when(c == 0)
    def _():
        h_scratch[...] = h0_ref[...]

    base_t = c * t_chunk

    def step_body(i):
        # layer 0: input-to-gates already precomputed outside the recurrence
        gi = gi0_ref[i]                                   # (B, 3E)
        h_prev = h_scratch[0]
        gh = jnp.dot(h_prev, whh_ref[0],
                     preferred_element_type=jnp.float32) + bhh_ref[0]
        x = _gru_cell(gi, gh, h_prev, E)
        h_scratch[0] = x
        for layer in range(1, n_layers):
            h_prev = h_scratch[layer]
            gi = jnp.dot(x, wih_ref[layer],
                         preferred_element_type=jnp.float32) + bih_ref[layer]
            gh = jnp.dot(h_prev, whh_ref[layer],
                         preferred_element_type=jnp.float32) + bhh_ref[layer]
            x = _gru_cell(gi, gh, h_prev, E)
            h_scratch[layer] = x
        yseq_ref[i] = x

    def loop_body(i, carry):
        if masked:
            @pl.when(base_t + i < t_total)
            def _():
                step_body(i)
        else:
            step_body(i)
        return carry

    jax.lax.fori_loop(0, t_chunk, loop_body, 0, unroll=unroll)

    # Resident output block: write every chunk (safe, cheap VMEM copy).
    hfin_ref[...] = h_scratch[...]


# --------------------------------------------------------------------------
# pallas_call wrappers
# --------------------------------------------------------------------------

def _rowwise_call(kernel, x, weights, dout, *, rt=256):
    """Row-tiled, grid-parallel call: x is (R, Din); weights broadcast to all rows."""
    R, din = x.shape
    rt = min(rt, R)
    args = (x,) + tuple(weights)
    in_specs = [pl.BlockSpec((rt, din), lambda r: (r, 0))]
    in_specs += [pl.BlockSpec(a.shape, lambda r, n=a.ndim: (0,) * n)
                 for a in weights]
    return pl.pallas_call(
        kernel,
        out_shape=jax.ShapeDtypeStruct((R, dout), jnp.float32),
        grid_spec=pltpu.PrefetchScalarGridSpec(
            num_scalar_prefetch=0,
            grid=(pl.cdiv(R, rt),),
            in_specs=in_specs,
            out_specs=pl.BlockSpec((rt, dout), lambda r: (r, 0)),
        ),
        compiler_params=pltpu.CompilerParams(
            dimension_semantics=("parallel",)),
    )(*args)


def run_mlp2(x, w1, b1, w2, b2, *, final_act, rt=256):
    kernel = functools.partial(mlp2_kernel, final_act=final_act)
    return _rowwise_call(kernel, x, (w1, b1, w2, b2), w2.shape[1], rt=rt)


def run_pre_gates(x, w1, b1, w2, b2, wg, bg, *, rt=256):
    return _rowwise_call(pre_gates_kernel, x, (w1, b1, w2, b2, wg, bg),
                         wg.shape[1], rt=rt)


def run_gru(gi0_tbe, wih_t, whh_t, bih, bhh, h0, *, n_layers, hidden,
            t_total, t_chunk, unroll=4):
    """gi0_tbe: (T_pad, B, 3E) time-major, T_pad a multiple of t_chunk."""
    T_pad, B, _ = gi0_tbe.shape
    num_chunks = T_pad // t_chunk
    masked = (T_pad != t_total)
    kernel = functools.partial(
        gru_chunk_kernel, n_layers=n_layers, hidden=hidden,
        t_total=t_total, t_chunk=t_chunk, masked=masked,
        unroll=min(unroll, t_chunk))
    yseq, hfin = pl.pallas_call(
        kernel,
        out_shape=(jax.ShapeDtypeStruct((T_pad, B, hidden), jnp.float32),
                   jax.ShapeDtypeStruct((n_layers, B, hidden), jnp.float32)),
        grid_spec=pltpu.PrefetchScalarGridSpec(
            num_scalar_prefetch=0,
            grid=(num_chunks,),
            in_specs=[
                pl.BlockSpec((t_chunk, B, 3 * hidden), lambda c: (c, 0, 0)),
                pl.BlockSpec((n_layers, hidden, 3 * hidden), lambda c: (0, 0, 0)),
                pl.BlockSpec((n_layers, hidden, 3 * hidden), lambda c: (0, 0, 0)),
                pl.BlockSpec((n_layers, 1, 3 * hidden), lambda c: (0, 0, 0)),
                pl.BlockSpec((n_layers, 1, 3 * hidden), lambda c: (0, 0, 0)),
                pl.BlockSpec((n_layers, B, hidden), lambda c: (0, 0, 0)),
            ],
            out_specs=[
                pl.BlockSpec((t_chunk, B, hidden), lambda c: (c, 0, 0)),
                pl.BlockSpec((n_layers, B, hidden), lambda c: (0, 0, 0)),
            ],
            scratch_shapes=[pltpu.VMEM((n_layers, B, hidden), jnp.float32)],
        ),
        compiler_params=pltpu.CompilerParams(
            dimension_semantics=("arbitrary",)),
    )(gi0_tbe, wih_t, whh_t, bih, bhh, h0)
    return yseq, hfin


# --------------------------------------------------------------------------
# Weight2HiddenGRU forward (glue around the kernels)
# --------------------------------------------------------------------------

def weight2hidden_gru_forward(params, input_volt, connection_weights,
                              init=None, random_init=False):
    B, C, T = input_volt.shape
    E = params["embed_dim"]
    L = params["n_layers"]

    # optional hidden_generator(connection_weights) -> initial hidden state
    if init is None and random_init:
        hg = run_mlp2(connection_weights, *params["hidden_generator"],
                      final_act=False)                              # (B, L*E)
        init = jnp.transpose(hg.reshape(B, L, E), (1, 0, 2))        # (L, B, E)
    if init is None:
        init = jnp.zeros((L, B, E), jnp.float32)
    h0 = init.astype(jnp.float32)

    # single transpose to time-major; everything downstream stays time-major
    x_tm = jnp.transpose(input_volt, (2, 0, 1)).reshape(T * B, C)   # (T*B, C)

    wih_t, whh_t, bih, bhh = params["rnn"]
    w1, b1, w2, b2 = params["pre_rnn"]

    # fused pre_rnn + layer-0 input-to-gates (hoisted out of the recurrence)
    gi0 = run_pre_gates(x_tm, w1, b1, w2, b2, wih_t[0], bih[0])     # (T*B, 3E)

    # time-chunked sequential GRU
    t_chunk = min(T, 128)
    n_chunks = pl.cdiv(T, t_chunk)
    T_pad = n_chunks * t_chunk
    gi0_tbe = gi0.reshape(T, B, 3 * E)
    if T_pad != T:
        gi0_tbe = jnp.pad(gi0_tbe, ((0, T_pad - T), (0, 0), (0, 0)))
    yseq, hidden = run_gru(gi0_tbe, wih_t, whh_t, bih, bhh, h0,
                           n_layers=L, hidden=E, t_total=T, t_chunk=t_chunk)

    # after_rnn on the time-major slab, then one final transpose to (B, out, T)
    y2d = yseq[:T].reshape(T * B, E)
    out = run_mlp2(y2d, *params["after_rnn"], final_act=False)      # (T*B, O)
    O = out.shape[-1]
    out = jnp.transpose(out.reshape(T, B, O), (1, 2, 0))            # (B, O, T)
    return out, hidden


# --------------------------------------------------------------------------
# Pure-JAX reference (mirrors the PyTorch module)
# --------------------------------------------------------------------------

def ref_mlp2(x, w1, b1, w2, b2, *, final_act):
    h = _leaky(x @ w1 + b1)
    y = h @ w2 + b2
    return _leaky(y) if final_act else y


def ref_gru(x_bte, wih_t, whh_t, bih, bhh, h0):
    L, E = wih_t.shape[0], wih_t.shape[1]

    def step(h, x_t):
        inp = x_t
        hs = []
        for l in range(L):
            gi = inp @ wih_t[l] + bih[l]
            gh = h[l] @ whh_t[l] + bhh[l]
            r = jax.nn.sigmoid(gi[:, :E] + gh[:, :E])
            z = jax.nn.sigmoid(gi[:, E:2 * E] + gh[:, E:2 * E])
            n = jnp.tanh(gi[:, 2 * E:] + r * gh[:, 2 * E:])
            hl = (1.0 - z) * n + z * h[l]
            hs.append(hl)
            inp = hl
        return jnp.stack(hs), inp

    hfin, ys = jax.lax.scan(step, h0, jnp.transpose(x_bte, (1, 0, 2)))
    return jnp.transpose(ys, (1, 0, 2)), hfin


def ref_forward(params, input_volt, connection_weights, init=None,
                random_init=False):
    B, C, T = input_volt.shape
    E, L = params["embed_dim"], params["n_layers"]
    if init is None and random_init:
        hg = ref_mlp2(connection_weights, *params["hidden_generator"],
                      final_act=False)
        init = jnp.transpose(hg.reshape(B, L, E), (1, 0, 2))
    if init is None:
        init = jnp.zeros((L, B, E), jnp.float32)
    x = jnp.transpose(input_volt, (0, 2, 1))                        # (B, T, C)
    pre = ref_mlp2(x, *params["pre_rnn"], final_act=True)           # (B, T, E)
    ys, hfin = ref_gru(pre, *params["rnn"], init)
    out = ref_mlp2(ys, *params["after_rnn"], final_act=False)       # (B, T, O)
    return jnp.transpose(out, (0, 2, 1)), hfin


# --------------------------------------------------------------------------
# Deterministic parameter init (pre-transposed layouts, done once)
# --------------------------------------------------------------------------

def init_params(key, in_channel, out_channel, n_layers):
    embed_dim = min(int(np.exp2(np.floor(np.log2(in_channel)) + 2)), 64)

    def split():
        nonlocal key
        key, sub = jax.random.split(key)
        return sub

    def linear(din, dout):
        w = jax.random.uniform(split(), (din, dout), jnp.float32, -0.3, 0.3)
        b = jax.random.uniform(split(), (1, dout), jnp.float32, -0.1, 0.1)
        return w, b

    def mlp2(din, dhid, dout):
        w1, b1 = linear(din, dhid)
        w2, b2 = linear(dhid, dout)
        return (w1, b1, w2, b2)

    def gru(E, L):
        # stored pre-transposed: (L, E, 3E), biases pre-reshaped to (L, 1, 3E)
        wih_t = jax.random.uniform(split(), (L, E, 3 * E), jnp.float32, -0.25, 0.25)
        whh_t = jax.random.uniform(split(), (L, E, 3 * E), jnp.float32, -0.25, 0.25)
        bih = jax.random.uniform(split(), (L, 1, 3 * E), jnp.float32, -0.1, 0.1)
        bhh = jax.random.uniform(split(), (L, 1, 3 * E), jnp.float32, -0.1, 0.1)
        return (wih_t, whh_t, bih, bhh)

    E = embed_dim
    return {
        "embed_dim": E,
        "n_layers": n_layers,
        "hidden_generator": mlp2(in_channel, E * n_layers, E * n_layers),
        "pre_rnn": mlp2(in_channel, E, E),
        "rnn": gru(E, n_layers),
        "after_rnn": mlp2(E, E, out_channel),
    }


# --------------------------------------------------------------------------
# Main
# --------------------------------------------------------------------------

if __name__ == "__main__":
    B, C, T = 2, 4, 16            # batch, in_channel (in_segment), trace_len
    out_channel = 3
    n_layers = 2

    key = jax.random.PRNGKey(0)
    kp, kx, kw = jax.random.split(key, 3)
    params = init_params(kp, C, out_channel, n_layers)
    E = params["embed_dim"]

    input_volt = jax.random.normal(kx, (B, C, T), jnp.float32)
    connection_weights = jax.random.normal(kw, (B, C), jnp.float32)

    # default path (init=None, random_init=False -> zero hidden init)
    out0, hid0 = weight2hidden_gru_forward(params, input_volt, connection_weights,
                                           random_init=False)
    # random_init path (exercises hidden_generator)
    out1, hid1 = weight2hidden_gru_forward(params, input_volt, connection_weights,
                                           random_init=True)
    jax.block_until_ready((out0, hid0, out1, hid1))

    assert out0.shape == (B, out_channel, T), out0.shape
    assert hid0.shape == (n_layers, B, E), hid0.shape
    assert out1.shape == (B, out_channel, T), out1.shape
    assert hid1.shape == (n_layers, B, E), hid1.shape

    r_out0, r_hid0 = ref_forward(params, input_volt, connection_weights,
                                 random_init=False)
    r_out1, r_hid1 = ref_forward(params, input_volt, connection_weights,
                                 random_init=True)

    np.testing.assert_allclose(np.asarray(out0), np.asarray(r_out0),
                               rtol=2e-3, atol=2e-3)
    np.testing.assert_allclose(np.asarray(hid0), np.asarray(r_hid0),
                               rtol=2e-3, atol=2e-3)
    np.testing.assert_allclose(np.asarray(out1), np.asarray(r_out1),
                               rtol=2e-3, atol=2e-3)
    np.testing.assert_allclose(np.asarray(hid1), np.asarray(r_hid1),
                               rtol=2e-3, atol=2e-3)

    print("KERNEL_OK")
</pallas_src>

<mosaic_0001>
module attributes {stable_mosaic.version = 11 : i64} {
  func.func @pre_gates_kernel(%arg0: i32, %arg1: memref<32x4xf32, #tpu.memory_space<vmem>>, %arg2: memref<4x16xf32, #tpu.memory_space<vmem>>, %arg3: memref<1x16xf32, #tpu.memory_space<vmem>>, %arg4: memref<16x16xf32, #tpu.memory_space<vmem>>, %arg5: memref<1x16xf32, #tpu.memory_space<vmem>>, %arg6: memref<16x48xf32, #tpu.memory_space<vmem>>, %arg7: memref<1x48xf32, #tpu.memory_space<vmem>>, %arg8: memref<32x48xf32, #tpu.memory_space<vmem>>) attributes {dimension_semantics = [#tpu.dimension_semantics<parallel>], iteration_bounds = array<i64: 1>, scalar_prefetch = 0 : i64, scratch_operands = 0 : i64, tpu.core_type = #tpu.core_type<tc>, window_params = [{transform_indices = @transform_0, window_bounds = array<i64: 32, 4>}, {pipeline_mode = #tpu.pipeline_mode<synchronous>, transform_indices = @transform_1, window_bounds = array<i64: 4, 16>}, {pipeline_mode = #tpu.pipeline_mode<synchronous>, transform_indices = @transform_2, window_bounds = array<i64: 1, 16>}, {pipeline_mode = #tpu.pipeline_mode<synchronous>, transform_indices = @transform_3, window_bounds = array<i64: 16, 16>}, {pipeline_mode = #tpu.pipeline_mode<synchronous>, transform_indices = @transform_4, window_bounds = array<i64: 1, 16>}, {pipeline_mode = #tpu.pipeline_mode<synchronous>, transform_indices = @transform_5, window_bounds = array<i64: 16, 48>}, {pipeline_mode = #tpu.pipeline_mode<synchronous>, transform_indices = @transform_6, window_bounds = array<i64: 1, 48>}, {transform_indices = @transform_7, window_bounds = array<i64: 32, 48>}]} {
    %c0 = arith.constant 0 : index
    %c0_0 = arith.constant 0 : index
    %0 = vector.load %arg1[%c0, %c0_0] : memref<32x4xf32, #tpu.memory_space<vmem>>, vector<32x4xf32>
    %c0_1 = arith.constant 0 : index
    %c0_2 = arith.constant 0 : index
    %1 = vector.load %arg2[%c0_1, %c0_2] : memref<4x16xf32, #tpu.memory_space<vmem>>, vector<4x16xf32>
    %cst = arith.constant dense<0.000000e+00> : vector<32x16xf32>
    %2 = tpu.matmul %0, %1, %cst {dimension_numbers = #tpu.dot_dimension_numbers<[1], [0], [0], [1], [0, 0, 1, 1], [], []>} : vector<32x4xf32>, vector<4x16xf32>, vector<32x16xf32> -> vector<32x16xf32>
    %c0_3 = arith.constant 0 : index
    %c0_4 = arith.constant 0 : index
    %3 = vector.load %arg3[%c0_3, %c0_4] : memref<1x16xf32, #tpu.memory_space<vmem>>, vector<1x16xf32>
    %4 = vector.broadcast %3 : vector<1x16xf32> to vector<32x16xf32>
    %5 = arith.addf %2, %4 : vector<32x16xf32>
    %cst_5 = arith.constant 0.000000e+00 : f32
    %6 = vector.broadcast %cst_5 : f32 to vector<32x16xf32>
    %7 = arith.cmpf ogt, %5, %6 : vector<32x16xf32>
    %cst_6 = arith.constant 2.000000e-01 : f32
    %8 = vector.broadcast %cst_6 : f32 to vector<32x16xf32>
    %9 = arith.mulf %8, %5 : vector<32x16xf32>
    %10 = arith.select %7, %5, %9 : vector<32x16xi1>, vector<32x16xf32>
    %c0_7 = arith.constant 0 : index
    %c0_8 = arith.constant 0 : index
    %11 = vector.load %arg4[%c0_7, %c0_8] : memref<16x16xf32, #tpu.memory_space<vmem>>, vector<16x16xf32>
    %cst_9 = arith.constant dense<0.000000e+00> : vector<32x16xf32>
    %12 = tpu.matmul %10, %11, %cst_9 {dimension_numbers = #tpu.dot_dimension_numbers<[1], [0], [0], [1], [0, 0, 1, 1], [], []>} : vector<32x16xf32>, vector<16x16xf32>, vector<32x16xf32> -> vector<32x16xf32>
    %c0_10 = arith.constant 0 : index
    %c0_11 = arith.constant 0 : index
    %13 = vector.load %arg5[%c0_10, %c0_11] : memref<1x16xf32, #tpu.memory_space<vmem>>, vector<1x16xf32>
    %14 = vector.broadcast %13 : vector<1x16xf32> to vector<32x16xf32>
    %15 = arith.addf %12, %14 : vector<32x16xf32>
    %cst_12 = arith.constant 0.000000e+00 : f32
    %16 = vector.broadcast %cst_12 : f32 to vector<32x16xf32>
    %17 = arith.cmpf ogt, %15, %16 : vector<32x16xf32>
    %cst_13 = arith.constant 2.000000e-01 : f32
    %18 = vector.broadcast %cst_13 : f32 to vector<32x16xf32>
    %19 = arith.mulf %18, %15 : vector<32x16xf32>
    %20 = arith.select %17, %15, %19 : vector<32x16xi1>, vector<32x16xf32>
    %c0_14 = arith.constant 0 : index
    %c0_15 = arith.constant 0 : index
    %21 = vector.load %arg6[%c0_14, %c0_15] : memref<16x48xf32, #tpu.memory_space<vmem>>, vector<16x48xf32>
    %cst_16 = arith.constant dense<0.000000e+00> : vector<32x48xf32>
    %22 = tpu.matmul %20, %21, %cst_16 {dimension_numbers = #tpu.dot_dimension_numbers<[1], [0], [0], [1], [0, 0, 1, 1], [], []>} : vector<32x16xf32>, vector<16x48xf32>, vector<32x48xf32> -> vector<32x48xf32>
    %c0_17 = arith.constant 0 : index
    %c0_18 = arith.constant 0 : index
    %23 = vector.load %arg7[%c0_17, %c0_18] : memref<1x48xf32, #tpu.memory_space<vmem>>, vector<1x48xf32>
    %24 = vector.broadcast %23 : vector<1x48xf32> to vector<32x48xf32>
    %25 = arith.addf %22, %24 : vector<32x48xf32>
    %c0_19 = arith.constant 0 : index
    %c0_20 = arith.constant 0 : index
    %26 = vector.load %arg8[%c0_19, %c0_20] : memref<32x48xf32, #tpu.memory_space<vmem>>, vector<32x48xf32>
    tpu.vector_store %arg8[%c0_19, %c0_20], %25 {strides = array<i32>} : memref<32x48xf32, #tpu.memory_space<vmem>>, vector<32x48xf32>,
    return
  }
  func.func @transform_0(%arg0: i32) -> (i32, i32) {
    %c0_i32 = arith.constant 0 : i32
    %c0_i32_0 = arith.constant 0 : i32
    return %arg0, %c0_i32 : i32, i32
  }
  func.func @transform_1(%arg0: i32) -> (i32, i32) {
    %c0_i32 = arith.constant 0 : i32
    %c0_i32_0 = arith.constant 0 : i32
    %c0_i32_1 = arith.constant 0 : i32
    return %c0_i32, %c0_i32_0 : i32, i32
  }
  func.func @transform_2(%arg0: i32) -> (i32, i32) {
    %c0_i32 = arith.constant 0 : i32
    %c0_i32_0 = arith.constant 0 : i32
    %c0_i32_1 = arith.constant 0 : i32
    return %c0_i32, %c0_i32_0 : i32, i32
  }
  func.func @transform_3(%arg0: i32) -> (i32, i32) {
    %c0_i32 = arith.constant 0 : i32
    %c0_i32_0 = arith.constant 0 : i32
    %c0_i32_1 = arith.constant 0 : i32
    return %c0_i32, %c0_i32_0 : i32, i32
  }
  func.func @transform_4(%arg0: i32) -> (i32, i32) {
    %c0_i32 = arith.constant 0 : i32
    %c0_i32_0 = arith.constant 0 : i32
    %c0_i32_1 = arith.constant 0 : i32
    return %c0_i32, %c0_i32_0 : i32, i32
  }
  func.func @transform_5(%arg0: i32) -> (i32, i32) {
    %c0_i32 = arith.constant 0 : i32
    %c0_i32_0 = arith.constant 0 : i32
    %c0_i32_1 = arith.constant 0 : i32
    return %c0_i32, %c0_i32_0 : i32, i32
  }
  func.func @transform_6(%arg0: i32) -> (i32, i32) {
    %c0_i32 = arith.constant 0 : i32
    %c0_i32_0 = arith.constant 0 : i32
    %c0_i32_1 = arith.constant 0 : i32
    return %c0_i32, %c0_i32_0 : i32, i32
  }
  func.func @transform_7(%arg0: i32) -> (i32, i32) {
    %c0_i32 = arith.constant 0 : i32
    %c0_i32_0 = arith.constant 0 : i32
    return %arg0, %c0_i32 : i32, i32
  }
}

</mosaic_0001>

<llo_original>
// kernel: tpu_custom_call.1
$region0: #{tpu_custom_call.1}
  #allocation0 [shape = 'u32[]', space=smem, size = 0x4, offset = 0x4, fixed_abs, tag = 'smem constant byte address 0x4 - core index']
  #allocation1 [shape = 'u32[72,128]{1,0:T(1,128)}', space=vmem, size = 0x9000, scoped, tag = 'internal scratch']
  %s0 = inlined_call_operand.vmem [shape: f32[32,4], index: 0, kind: input, shape index: {}]
  %s1 = inlined_call_operand.vmem [shape: f32[4,16], index: 1, kind: input, shape index: {}]
  %s2 = inlined_call_operand.vmem [shape: f32[1,16], index: 2, kind: input, shape index: {}]
  %s3 = inlined_call_operand.vmem [shape: f32[16,16], index: 3, kind: input, shape index: {}]
  %s4 = inlined_call_operand.vmem [shape: f32[1,16], index: 4, kind: input, shape index: {}]
  %s5 = inlined_call_operand.vmem [shape: f32[16,48], index: 5, kind: input, shape index: {}]
  %s6 = inlined_call_operand.vmem [shape: f32[1,48], index: 6, kind: input, shape index: {}]
  %s7 = inlined_call_operand.hbm [shape: f32[32,48], index: 7, kind: output, shape index: {}]
  %s8 = sld [smem:[#allocation0]]
  $region38: #{tpu_custom_call.1} parent=0
    _
  %s10 = ssub.s32 1, %s8
  %s11 = scalar_select 0, %s10, %s8
  $region1: #{tpu_custom_call.1} parent=0
    #allocation2 [shape = 'u8[16384]{0}', space=vmem, size = 0x4000, scoped, tag = 'output window, operand 0, single buffered']
    #allocation3 [shape = 's32[1]{0}', space=sflag, size = 0x4, scoped, tag = 'scoped memory for tpu_custom_call.1']
    %12 = vsyncpa [#allocation3], 0
    // Predicated region
    $region2: #{tpu_custom_call.1} parent=1 // pred_check
      _
    $region3: #{tpu_custom_call.1} parent=1 // pred_check_branch
      %14 = sbr.rel (0) target = $region5
    $region4: #{tpu_custom_call.1} parent=1 // pred_region
      _
    $region5: #{tpu_custom_call.1} parent=1 // pred_fallthru
      _
    // Predicated region
    $region6: #{tpu_custom_call.1} parent=1 // pred_check
      _
    $region7: #{tpu_custom_call.1} parent=1 // pred_check_branch
      %16 = sbr.rel (0) target = $region9
    $region8: #{tpu_custom_call.1} parent=1 // pred_region
      _
    $region9: #{tpu_custom_call.1} parent=1 // pred_fallthru
      _
    // Predicated region
    $region10: #{tpu_custom_call.1} parent=1 // pred_check
      _
    $region11: #{tpu_custom_call.1} parent=1 // pred_check_branch
      %18 = sbr.rel (0) target = $region13
    $region12: #{tpu_custom_call.1} parent=1 // pred_region
      _
    $region13: #{tpu_custom_call.1} parent=1 // pred_fallthru
      _
    // Predicated region
    $region14: #{tpu_custom_call.1} parent=1 // pred_check
      _
    $region15: #{tpu_custom_call.1} parent=1 // pred_check_branch
      %20 = sbr.rel (0) target = $region17
    $region16: #{tpu_custom_call.1} parent=1 // pred_region
      _
    $region17: #{tpu_custom_call.1} parent=1 // pred_fallthru
      _
    // Predicated region
    $region18: #{tpu_custom_call.1} parent=1 // pred_check
      _
    $region19: #{tpu_custom_call.1} parent=1 // pred_check_branch
      %22 = sbr.rel (0) target = $region21
    $region20: #{tpu_custom_call.1} parent=1 // pred_region
      _
    $region21: #{tpu_custom_call.1} parent=1 // pred_fallthru
      _
    // Predicated region
    $region22: #{tpu_custom_call.1} parent=1 // pred_check
      _
    $region23: #{tpu_custom_call.1} parent=1 // pred_check_branch
      %24 = sbr.rel (0) target = $region25
    $region24: #{tpu_custom_call.1} parent=1 // pred_region
      _
    $region25: #{tpu_custom_call.1} parent=1 // pred_fallthru
      _
    // Predicated region
    $region26: #{tpu_custom_call.1} parent=1 // pred_check
      _
    $region27: #{tpu_custom_call.1} parent=1 // pred_check_branch
      %26 = sbr.rel (0) target = $region29
    $region28: #{tpu_custom_call.1} parent=1 // pred_region
      _
    $region29: #{tpu_custom_call.1} parent=1 // pred_fallthru
      _
    %v27 = vld [vmem:[%s0] sm:$0xff]
    %v28 = vld [vmem:[%s0 + $0x8] sm:$0xff]
    %v29 = vld [vmem:[%s0 + $0x10] sm:$0xff]
    %v30 = vld [vmem:[%s0 + $0x18] sm:$0xff]
    %v31 = vld [vmem:[%s1] sm:$0xf]
    %v32 = vld [vmem:[%s2] sm:$0x1]
    %v34 = vperm.slane %v32, 0
    %vm36 = vcmask 31744
    %v38 = vsel %vm36, %v27, 0
    %v41 = vsel %vm36, %v28, 0
    %v44 = vsel %vm36, %v29, 0
    %v47 = vsel %vm36, %v30, 0
    %vm49 = vcmask 1043456
    %v51 = vsel %vm49, %v31, 0
    %53 = vmatpush.msra.mxu0 0.0
    %54 = vmatpush.msra.mxu0 0.0
    %55 = vmatpush.msra.mxu0 0.0
    %56 = vmatpush.msra.mxu0 0.0
    %57 = vmatpush.msra.mxu0 0.0
    %58 = vmatpush.msra.mxu0 0.0
    %59 = vmatpush.msra.mxu0 0.0
    %60 = vmatpush.msra.mxu0 0.0
    %61 = vmatpush.msra.mxu0 0.0
    %62 = vmatpush.msra.mxu0 0.0
    %63 = vmatpush.msra.mxu0 0.0
    %64 = vmatpush.msra.mxu0 0.0
    %65 = vmatpush.msra.mxu0 0.0
    %66 = vmatpush.msra.mxu0 0.0
    %67 = vmatpush.msra.mxu0 0.0
    %68 = vmatpush.msra.mxu0 %v51
    %69 = vmatmul.f32.gmra.mxu0 %v38
    %v70 = vpop.f32.mrf.mxu0
    %v71 = vadd.f32 %v34, %v70
    %72 = vmatmul.f32.gmra.mxu0 %v41
    %v73 = vpop.f32.mrf.mxu0
    %v74 = vadd.f32 %v34, %v73
    %75 = vmatmul.f32.gmra.mxu0 %v44
    %v76 = vpop.f32.mrf.mxu0
    %v77 = vadd.f32 %v34, %v76
    %78 = vmatmul.f32.gmra.mxu0 %v47
    %v79 = vpop.f32.mrf.mxu0
    %v80 = vadd.f32 %v34, %v79
    %81 = vdwg.mxu0
    %vm82 = vcmp.gt.f32.partialorder %v71, 0.0
    %vm83 = vcmp.gt.f32.partialorder %v74, 0.0
    %vm84 = vcmp.gt.f32.partialorder %v77, 0.0
    %vm85 = vcmp.gt.f32.partialorder %v80, 0.0
    %v86 = vmul.f32 %v71, 0.2
    %v87 = vmul.f32 %v74, 0.2
    %v88 = vmul.f32 %v77, 0.2
    %v89 = vmul.f32 %v80, 0.2
    %v90 = vsel %vm82, %v71, %v86
    %v91 = vsel %vm83, %v74, %v87
    %v92 = vsel %vm84, %v77, %v88
    %v93 = vsel %vm85, %v80, %v89
    %v94 = vld [vmem:[%s3] sm:$0xff]
    %v95 = vld [vmem:[%s3 + $0x8] sm:$0xff]
    %v96 = vld [vmem:[%s4] sm:$0x1]
    %v98 = vperm.slane %v96, 0
    %vm100 = vcmask 130048
    %v102 = vsel %vm100, %v90, 0
    %v105 = vsel %vm100, %v91, 0
    %v108 = vsel %vm100, %v92, 0
    %v111 = vsel %vm100, %v93, 0
    %113 = vmatpush.msra.mxu0 0.0
    %114 = vmatpush.msra.mxu0 0.0
    %115 = vmatpush.msra.mxu0 0.0
    %116 = vmatpush.msra.mxu0 0.0
    %117 = vmatpush.msra.mxu0 0.0
    %118 = vmatpush.msra.mxu0 0.0
    %119 = vmatpush.msra.mxu0 0.0
    %120 = vmatpush.msra.mxu0 0.0
    %121 = vmatpush.msra.mxu0 0.0
    %122 = vmatpush.msra.mxu0 0.0
    %123 = vmatpush.msra.mxu0 0.0
    %124 = vmatpush.msra.mxu0 0.0
    %125 = vmatpush.msra.mxu0 0.0
    %126 = vmatpush.msra.mxu0 0.0
    %127 = vmatpush.msra.mxu0 %v95
    %128 = vmatpush.msra.mxu0 %v94
    %129 = vmatmul.f32.gmra.mxu0 %v102
    %v130 = vpop.f32.mrf.mxu0
    %v131 = vadd.f32 %v98, %v130
    %132 = vmatmul.f32.gmra.mxu0 %v105
    %v133 = vpop.f32.mrf.mxu0
    %v134 = vadd.f32 %v98, %v133
    %135 = vmatmul.f32.gmra.mxu0 %v108
    %v136 = vpop.f32.mrf.mxu0
    %v137 = vadd.f32 %v98, %v136
    %138 = vmatmul.f32.gmra.mxu0 %v111
    %v139 = vpop.f32.mrf.mxu0
    %v140 = vadd.f32 %v98, %v139
    %141 = vdwg.mxu0
    %vm142 = vcmp.gt.f32.partialorder %v131, 0.0
    %vm143 = vcmp.gt.f32.partialorder %v134, 0.0
    %vm144 = vcmp.gt.f32.partialorder %v137, 0.0
    %vm145 = vcmp.gt.f32.partialorder %v140, 0.0
    %v146 = vmul.f32 %v131, 0.2
    %v147 = vmul.f32 %v134, 0.2
    %v148 = vmul.f32 %v137, 0.2
    %v149 = vmul.f32 %v140, 0.2
    %v150 = vsel %vm142, %v131, %v146
    %v151 = vsel %vm143, %v134, %v147
    %v152 = vsel %vm144, %v137, %v148
    %v153 = vsel %vm145, %v140, %v149
    %v154 = vld [vmem:[%s5] sm:$0xff]
    %v155 = vld [vmem:[%s5 + $0x8] sm:$0xff]
    %v156 = vld [vmem:[%s6] sm:$0x1]
    %v158 = vperm.slane %v156, 0
    %v161 = vsel %vm100, %v150, 0
    %v164 = vsel %vm100, %v151, 0
    %v167 = vsel %vm100, %v152, 0
    %v170 = vsel %vm100, %v153, 0
    %172 = vmatpush.msra.mxu0 0.0
    %173 = vmatpush.msra.mxu0 0.0
    %174 = vmatpush.msra.mxu0 0.0
    %175 = vmatpush.msra.mxu0 0.0
    %176 = vmatpush.msra.mxu0 0.0
    %177 = vmatpush.msra.mxu0 0.0
    %178 = vmatpush.msra.mxu0 0.0
    %179 = vmatpush.msra.mxu0 0.0
    %180 = vmatpush.msra.mxu0 0.0
    %181 = vmatpush.msra.mxu0 0.0
    %182 = vmatpush.msra.mxu0 0.0
    %183 = vmatpush.msra.mxu0 0.0
    %184 = vmatpush.msra.mxu0 0.0
    %185 = vmatpush.msra.mxu0 0.0
    %186 = vmatpush.msra.mxu0 %v155
    %187 = vmatpush.msra.mxu0 %v154
    %188 = vmatmul.f32.gmra.mxu0 %v161
    %v189 = vpop.f32.mrf.mxu0
    %v190 = vadd.f32 %v158, %v189
    %191 = vmatmul.f32.gmra.mxu0 %v164
    %v192 = vpop.f32.mrf.mxu0
    %v193 = vadd.f32 %v158, %v192
    %194 = vmatmul.f32.gmra.mxu0 %v167
    %v195 = vpop.f32.mrf.mxu0
    %v196 = vadd.f32 %v158, %v195
    %197 = vmatmul.f32.gmra.mxu0 %v170
    %v198 = vpop.f32.mrf.mxu0
    %v199 = vadd.f32 %v158, %v198
    %200 = vdwg.mxu0
    %vm201 = vcmask 392192
    %202 = vst.msk [vmem:[#allocation2] sm:$0xff] %vm201, %v190
    %203 = vst.msk [vmem:[#allocation2 + $0x8] sm:$0xff] %vm201, %v193
    %204 = vst.msk [vmem:[#allocation2 + $0x10] sm:$0xff] %vm201, %v196
    %205 = vst.msk [vmem:[#allocation2 + $0x18] sm:$0xff] %vm201, %v199
    // Predicated region
    $region30: #{tpu_custom_call.1} parent=1 // pred_check
      _
    $region31: #{tpu_custom_call.1} parent=1 // pred_check_branch
      %207 = sbr.rel (0) target = $region33
    $region32: #{tpu_custom_call.1} parent=1 // pred_region
      %209 = vsyncadd [#allocation3], 0
      %s210 = sshll.u32 [#allocation2], 4
      %s211 = int_to_ptr.vmem [resolvable:$true] %s210
      %s212 = sshll.u32 %s7, 4
      %s213 = int_to_ptr.hbm [resolvable:$true] %s212
      %218 = dma.vmem_to_hbm [thread:$0]  %s211, 512, %s213, [#allocation3], 128, 128, 8
    $region33: #{tpu_custom_call.1} parent=1 // pred_fallthru
      _
    // Predicated region
    $region34: #{tpu_custom_call.1} parent=1 // pred_check
      _
    $region35: #{tpu_custom_call.1} parent=1 // pred_check_branch
      %220 = sbr.rel (0) target = $region37
    $region36: #{tpu_custom_call.1} parent=1 // pred_region
      %222 = dma.done [#allocation3], 512
    $region37: #{tpu_custom_call.1} parent=1 // pred_fallthru
      _
    %223 = vsyncpa [#allocation3], 1

</llo_original>
